<compile_context>
chip_gen: v7x
topology: tpu7x:2x2x1
jax: 0.10.0
libtpu: 0.0.40
codegen_flags: <defaults>
</compile_context>

<pallas_src>
import math
from functools import partial

import numpy as np
import jax
import jax.numpy as jnp
from jax.experimental import pallas as pl
from jax.experimental.pallas import tpu as pltpu

_EPS = 1e-5
_LANE = 128      # lane tile (last dim)
_SUBLANE = 8     # f32 sublane tile (second-to-last dim)


def _round_up(v, m):
    return ((v + m - 1) // m) * m


# ------------------------------------------------------------------ parameters

def _linear_w(key, f_in, f_out):
    # PyTorch nn.Linear init: kaiming_uniform(a=sqrt(5)) -> U(-1/sqrt(fan_in), 1/sqrt(fan_in)).
    # Stored pre-transposed as (f_in, f_out) so every step computes x @ W.
    bound = 1.0 / math.sqrt(f_in)
    return jax.random.uniform(key, (f_in, f_out), jnp.float32, -bound, bound)


def init_dec_steps(key, n_out, layer_scaling):
    """Flattens Dec.__init__'s module list into a per-Linear step list.

    Every step computes y = [relu]([resid +][BN](x @ w)); the flags mark which
    parts apply and whether this step's *input* is saved as the residual.
    """
    steps = []
    for i in range(len(layer_scaling) - 1):
        layer = layer_scaling[i]
        layer_out = layer_scaling[i + 1]
        ch_in = n_out // layer
        ch_hidden = n_out // (layer * 4)
        # ResidualBlock1d(ch_in, ch_hidden, n_layers=layer)
        for _ in range(layer):
            key, k1, k2 = jax.random.split(key, 3)
            steps.append(dict(w=_linear_w(k1, ch_in, ch_hidden),
                              g=jnp.ones((ch_hidden,), jnp.float32),
                              b=jnp.zeros((ch_hidden,), jnp.float32),
                              bn=1, relu=1, add_res=0, save_res=1))
            steps.append(dict(w=_linear_w(k2, ch_hidden, ch_in),
                              g=jnp.ones((ch_in,), jnp.float32),
                              b=jnp.zeros((ch_in,), jnp.float32),
                              bn=1, relu=1, add_res=1, save_res=0))
        # BasicLayer(ch_in, n_out // layer_out)
        key, kb = jax.random.split(key)
        f_out = n_out // layer_out
        steps.append(dict(w=_linear_w(kb, ch_in, f_out),
                          g=jnp.ones((f_out,), jnp.float32),
                          b=jnp.zeros((f_out,), jnp.float32),
                          bn=1, relu=1, add_res=0, save_res=0))
    # Final nn.Linear(n_out // layer_scaling[-1], n_out, bias=False)
    key, kf = jax.random.split(key)
    steps.append(dict(w=_linear_w(kf, n_out // layer_scaling[-1], n_out),
                      g=jnp.ones((n_out,), jnp.float32),
                      b=jnp.zeros((n_out,), jnp.float32),
                      bn=0, relu=0, add_res=0, save_res=0))
    return steps


def pack_dec_steps(steps):
    """Zero-pads every layer to lane-dense (f_max, f_max) slabs and stacks all
    layers so one pallas_call streams one layer per sequential grid step."""
    f_max = _LANE
    for s in steps:
        f_max = max(f_max,
                    _round_up(s["w"].shape[0], _LANE),
                    _round_up(s["w"].shape[1], _LANE))
    n_steps = len(steps)
    w_all = np.zeros((n_steps, f_max, f_max), np.float32)
    g_all = np.ones((n_steps, 1, f_max), np.float32)
    b_all = np.zeros((n_steps, 1, f_max), np.float32)
    flags = np.zeros((n_steps * 4,), np.int32)
    for idx, s in enumerate(steps):
        f_in, f_out = s["w"].shape
        w_all[idx, :f_in, :f_out] = np.asarray(s["w"])
        g_all[idx, 0, :f_out] = np.asarray(s["g"])
        b_all[idx, 0, :f_out] = np.asarray(s["b"])
        flags[idx * 4:(idx + 1) * 4] = [s["bn"], s["relu"], s["add_res"], s["save_res"]]
    return dict(
        w=jnp.asarray(w_all, jnp.bfloat16),   # bf16 weights: MXU-native, half the DMA
        g=jnp.asarray(g_all),
        b=jnp.asarray(b_all),
        flags=jnp.asarray(flags),             # flat 1-D int32 -> tiny SMEM footprint
        f_max=f_max, n_steps=n_steps,
        f_in0=steps[0]["w"].shape[0], f_out_last=steps[-1]["w"].shape[1],
    )


# ---------------------------------------------------------------------- kernel

def _dec_kernel(flags_ref,                       # SMEM (scalar prefetch)
                x_ref, w_ref, g_ref, b_ref,      # VMEM inputs
                o_ref,                           # VMEM output
                act_ref, res_ref,                # VMEM scratch
                *, batch):
    """One grid step == one Linear(+BN +residual +ReLU) layer of Dec.

    The activation lives in VMEM scratch across the sequential grid; padded
    batch rows / feature cols are kept exactly zero so the training-mode
    BatchNorm batch statistics over the real `batch` rows stay exact."""
    step = pl.program_id(0)

    @pl.when(step == 0)
    def _():
        act_ref[...] = x_ref[...]
        res_ref[...] = x_ref[...]

    bn_f = flags_ref[step * 4 + 0]
    relu_f = flags_ref[step * 4 + 1]
    add_f = flags_ref[step * 4 + 2]
    save_f = flags_ref[step * 4 + 3]

    x = act_ref[...]                             # (B_pad, F_pad) f32

    @pl.when(save_f == 1)
    def _():
        res_ref[...] = x                         # save residual-skip input

    # MXU matmul: bf16 operands, f32 accumulation.
    z = jnp.dot(x.astype(jnp.bfloat16), w_ref[0],
                preferred_element_type=jnp.float32)

    # Training-mode BatchNorm1d (batch mean, biased variance), single pass.
    # Padded batch rows of z are exactly zero, so plain sums equal sums over
    # the real rows; divide by the real batch size.
    inv_b = 1.0 / batch
    mean = jnp.sum(z, axis=0, keepdims=True) * inv_b
    ex2 = jnp.sum(z * z, axis=0, keepdims=True) * inv_b
    var = jnp.maximum(ex2 - mean * mean, 0.0)
    z_bn = (z - mean) * jax.lax.rsqrt(var + _EPS) * g_ref[0] + b_ref[0]
    z = jnp.where(bn_f == 1, z_bn, z)

    z = jnp.where(add_f == 1, z + res_ref[...], z)
    z = jnp.where(relu_f == 1, jnp.maximum(z, 0.0), z)

    # Re-zero padded batch rows (BN's -mean/std + beta shifted them off zero).
    row = jax.lax.broadcasted_iota(jnp.int32, (z.shape[0], 1), dimension=0)
    z = jnp.where(row < batch, z, 0.0)

    act_ref[...] = z

    @pl.when(step == pl.num_programs(0) - 1)
    def _():
        o_ref[...] = z


def dec_forward(packed, x):
    """Full Dec forward as a single fused Pallas call."""
    b, f_in0 = x.shape
    assert f_in0 == packed["f_in0"]
    f_max = packed["f_max"]
    n_steps = packed["n_steps"]
    b_pad = _round_up(max(b, _SUBLANE), _SUBLANE)

    x_pad = jnp.zeros((b_pad, f_max), jnp.float32).at[:b, :f_in0].set(x)

    grid_spec = pltpu.PrefetchScalarGridSpec(
        num_scalar_prefetch=1,                                         # flags -> SMEM
        grid=(n_steps,),
        in_specs=[
            pl.BlockSpec((b_pad, f_max), lambda s, fl: (0, 0)),        # x (resident)
            pl.BlockSpec((1, f_max, f_max), lambda s, fl: (s, 0, 0)),  # per-layer W
            pl.BlockSpec((1, 1, f_max), lambda s, fl: (s, 0, 0)),      # per-layer gamma
            pl.BlockSpec((1, 1, f_max), lambda s, fl: (s, 0, 0)),      # per-layer beta
        ],
        out_specs=pl.BlockSpec((b_pad, f_max), lambda s, fl: (0, 0)),
        scratch_shapes=[pltpu.VMEM((b_pad, f_max), jnp.float32),       # activation
                        pltpu.VMEM((b_pad, f_max), jnp.float32)],      # residual save
    )

    out = pl.pallas_call(
        partial(_dec_kernel, batch=b),
        grid_spec=grid_spec,
        out_shape=jax.ShapeDtypeStruct((b_pad, f_max), jnp.float32),
        compiler_params=pltpu.CompilerParams(
            # Sequential layer chain (state carried in scratch) => arbitrary.
            dimension_semantics=("arbitrary",),
        ),
    )(packed["flags"], x_pad, packed["w"], packed["g"], packed["b"])

    return out[:b, :packed["f_out_last"]]


# ------------------------------------------------------------------- reference

def dec_reference(steps, x):
    """Pure-JAX reference (same math: bf16 matmul, train-mode BatchNorm1d)."""
    resid = x
    for s in steps:
        if s["save_res"]:
            resid = x
        z = jnp.dot(x.astype(jnp.bfloat16), s["w"].astype(jnp.bfloat16),
                    preferred_element_type=jnp.float32)
        if s["bn"]:
            mean = jnp.mean(z, axis=0, keepdims=True)
            var = jnp.mean(jnp.square(z - mean), axis=0, keepdims=True)
            z = (z - mean) * jax.lax.rsqrt(var + _EPS) * s["g"] + s["b"]
        if s["add_res"]:
            z = z + resid
        if s["relu"]:
            z = jnp.maximum(z, 0.0)
        x = z
    return x


if __name__ == "__main__":
    # Small config consistent with Dec's divisibility constraints
    # (n_out % (layer*4) == 0).  The library default [128,64,32,16,8] builds
    # 240 residual layers; this reduced scaling keeps the test small.
    N_OUT = 128
    LAYER_SCALING = [8, 4, 2]
    B = 2

    key = jax.random.PRNGKey(0)
    key, kx, kp = jax.random.split(key, 3)
    x = jax.random.normal(kx, (B, N_OUT // LAYER_SCALING[0]), jnp.float32)  # (2, 16)

    steps = init_dec_steps(kp, N_OUT, LAYER_SCALING)
    packed = pack_dec_steps(steps)

    fwd = jax.jit(lambda xx: dec_forward(packed, xx))
    y = jax.block_until_ready(fwd(x))

    assert y.shape == (B, N_OUT), y.shape
    assert y.dtype == jnp.float32
    assert bool(jnp.all(jnp.isfinite(y)))

    # Correctness vs. pure-JAX reference (loose tolerance: bf16 matmul path).
    y_ref = jax.jit(lambda xx: dec_reference(steps, xx))(x)
    assert bool(jnp.allclose(y, y_ref, atol=5e-2, rtol=5e-2)), (
        float(jnp.max(jnp.abs(y - y_ref))))

    print("KERNEL_OK")
</pallas_src>

<mosaic_0001>
module attributes {stable_mosaic.version = 11 : i64} {
  func.func @_dec_kernel(%arg0: i32, %arg1: memref<108xi32, #tpu.memory_space<smem>>, %arg2: memref<8x128xf32, #tpu.memory_space<vmem>>, %arg3: memref<1x128x128xbf16, #tpu.memory_space<vmem>>, %arg4: memref<1x1x128xf32, #tpu.memory_space<vmem>>, %arg5: memref<1x1x128xf32, #tpu.memory_space<vmem>>, %arg6: memref<8x128xf32, #tpu.memory_space<vmem>>, %arg7: memref<8x128xf32, #tpu.memory_space<vmem>>, %arg8: memref<8x128xf32, #tpu.memory_space<vmem>>) attributes {dimension_semantics = [#tpu.dimension_semantics<arbitrary>], iteration_bounds = array<i64: 27>, scalar_prefetch = 1 : i64, scratch_operands = 2 : i64, tpu.core_type = #tpu.core_type<tc>, window_params = [{pipeline_mode = #tpu.pipeline_mode<synchronous>, transform_indices = @transform_0, window_bounds = array<i64: 8, 128>}, {transform_indices = @transform_1, window_bounds = array<i64: 1, 128, 128>}, {transform_indices = @transform_2, window_bounds = array<i64: 1, 1, 128>}, {transform_indices = @transform_3, window_bounds = array<i64: 1, 1, 128>}, {pipeline_mode = #tpu.pipeline_mode<synchronous>, transform_indices = @transform_4, window_bounds = array<i64: 8, 128>}]} {
    %c0_i32 = arith.constant 0 : i32
    %0 = arith.cmpi eq, %arg0, %c0_i32 : i32
    %1 = arith.extui %0 : i1 to i32
    %c0_i32_0 = arith.constant 0 : i32
    %2 = arith.cmpi ne, %1, %c0_i32_0 : i32
    scf.if %2 {
      %c0_34 = arith.constant 0 : index
      %c0_35 = arith.constant 0 : index
      %76 = vector.load %arg2[%c0_34, %c0_35] : memref<8x128xf32, #tpu.memory_space<vmem>>, vector<8x128xf32>
      %c0_36 = arith.constant 0 : index
      %c0_37 = arith.constant 0 : index
      %77 = vector.load %arg7[%c0_36, %c0_37] : memref<8x128xf32, #tpu.memory_space<vmem>>, vector<8x128xf32>
      tpu.vector_store %arg7[%c0_36, %c0_37], %76 {strides = array<i32>} : memref<8x128xf32, #tpu.memory_space<vmem>>, vector<8x128xf32>,
      %c0_38 = arith.constant 0 : index
      %c0_39 = arith.constant 0 : index
      %78 = vector.load %arg2[%c0_38, %c0_39] : memref<8x128xf32, #tpu.memory_space<vmem>>, vector<8x128xf32>
      %c0_40 = arith.constant 0 : index
      %c0_41 = arith.constant 0 : index
      %79 = vector.load %arg8[%c0_40, %c0_41] : memref<8x128xf32, #tpu.memory_space<vmem>>, vector<8x128xf32>
      tpu.vector_store %arg8[%c0_40, %c0_41], %78 {strides = array<i32>} : memref<8x128xf32, #tpu.memory_space<vmem>>, vector<8x128xf32>,
    } else {
    }
    %c4_i32 = arith.constant 4 : i32
    %3 = arith.muli %arg0, %c4_i32 : i32
    %c0_i32_1 = arith.constant 0 : i32
    %4 = arith.addi %3, %c0_i32_1 : i32
    %5 = arith.index_cast %4 : i32 to index
    %6 = memref.load %arg1[%5] : memref<108xi32, #tpu.memory_space<smem>>
    %c4_i32_2 = arith.constant 4 : i32
    %7 = arith.muli %arg0, %c4_i32_2 : i32
    %c1_i32 = arith.constant 1 : i32
    %8 = arith.addi %7, %c1_i32 : i32
    %9 = arith.index_cast %8 : i32 to index
    %10 = memref.load %arg1[%9] : memref<108xi32, #tpu.memory_space<smem>>
    %c4_i32_3 = arith.constant 4 : i32
    %11 = arith.muli %arg0, %c4_i32_3 : i32
    %c2_i32 = arith.constant 2 : i32
    %12 = arith.addi %11, %c2_i32 : i32
    %13 = arith.index_cast %12 : i32 to index
    %14 = memref.load %arg1[%13] : memref<108xi32, #tpu.memory_space<smem>>
    %c4_i32_4 = arith.constant 4 : i32
    %15 = arith.muli %arg0, %c4_i32_4 : i32
    %c3_i32 = arith.constant 3 : i32
    %16 = arith.addi %15, %c3_i32 : i32
    %17 = arith.index_cast %16 : i32 to index
    %18 = memref.load %arg1[%17] : memref<108xi32, #tpu.memory_space<smem>>
    %c0 = arith.constant 0 : index
    %c0_5 = arith.constant 0 : index
    %19 = vector.load %arg7[%c0, %c0_5] : memref<8x128xf32, #tpu.memory_space<vmem>>, vector<8x128xf32>
    %c1_i32_6 = arith.constant 1 : i32
    %20 = arith.cmpi eq, %18, %c1_i32_6 : i32
    %21 = arith.extui %20 : i1 to i32
    %c0_i32_7 = arith.constant 0 : i32
    %22 = arith.cmpi ne, %21, %c0_i32_7 : i32
    scf.if %22 {
      %c0_34 = arith.constant 0 : index
      %c0_35 = arith.constant 0 : index
      %76 = vector.load %arg8[%c0_34, %c0_35] : memref<8x128xf32, #tpu.memory_space<vmem>>, vector<8x128xf32>
      tpu.vector_store %arg8[%c0_34, %c0_35], %19 {strides = array<i32>} : memref<8x128xf32, #tpu.memory_space<vmem>>, vector<8x128xf32>,
    } else {
    }
    %23 = arith.truncf %19 : vector<8x128xf32> to vector<8x128xbf16>
    %c0_8 = arith.constant 0 : index
    %c0_9 = arith.constant 0 : index
    %c0_10 = arith.constant 0 : index
    %24 = vector.load %arg3[%c0_8, %c0_9, %c0_10] : memref<1x128x128xbf16, #tpu.memory_space<vmem>>, vector<1x128x128xbf16>
    %25 = vector.shape_cast %24 : vector<1x128x128xbf16> to vector<128x128xbf16>
    %cst = arith.constant dense<0.000000e+00> : vector<8x128xf32>
    %26 = tpu.matmul %23, %25, %cst {dimension_numbers = #tpu.dot_dimension_numbers<[1], [0], [0], [1], [0, 0, 1, 1], [], []>} : vector<8x128xbf16>, vector<128x128xbf16>, vector<8x128xf32> -> vector<8x128xf32>
    %cst_11 = arith.constant dense<0.000000e+00> : vector<128xf32>
    %27 = vector.multi_reduction <add>, %26, %cst_11 [0] : vector<8x128xf32> to vector<128xf32>
    %28 = vector.shape_cast %27 : vector<128xf32> to vector<1x128xf32>
    %cst_12 = arith.constant 5.000000e-01 : f32
    %29 = vector.broadcast %cst_12 : f32 to vector<1x128xf32>
    %30 = arith.mulf %28, %29 : vector<1x128xf32>
    %31 = arith.mulf %26, %26 : vector<8x128xf32>
    %cst_13 = arith.constant dense<0.000000e+00> : vector<128xf32>
    %32 = vector.multi_reduction <add>, %31, %cst_13 [0] : vector<8x128xf32> to vector<128xf32>
    %33 = vector.shape_cast %32 : vector<128xf32> to vector<1x128xf32>
    %cst_14 = arith.constant 5.000000e-01 : f32
    %34 = vector.broadcast %cst_14 : f32 to vector<1x128xf32>
    %35 = arith.mulf %33, %34 : vector<1x128xf32>
    %36 = arith.mulf %30, %30 : vector<1x128xf32>
    %37 = arith.subf %35, %36 : vector<1x128xf32>
    %cst_15 = arith.constant 0.000000e+00 : f32
    %38 = vector.broadcast %cst_15 : f32 to vector<1x128xf32>
    %39 = arith.maximumf %37, %38 : vector<1x128xf32>
    %40 = vector.broadcast %30 : vector<1x128xf32> to vector<8x128xf32>
    %41 = arith.subf %26, %40 : vector<8x128xf32>
    %cst_16 = arith.constant 9.99999974E-6 : f32
    %42 = vector.broadcast %cst_16 : f32 to vector<1x128xf32>
    %43 = arith.addf %39, %42 : vector<1x128xf32>
    %44 = math.rsqrt %43 : vector<1x128xf32>
    %45 = vector.broadcast %44 : vector<1x128xf32> to vector<8x128xf32>
    %46 = arith.mulf %41, %45 : vector<8x128xf32>
    %c0_17 = arith.constant 0 : index
    %c0_18 = arith.constant 0 : index
    %c0_19 = arith.constant 0 : index
    %47 = vector.load %arg4[%c0_17, %c0_18, %c0_19] : memref<1x1x128xf32, #tpu.memory_space<vmem>>, vector<1x1x128xf32>
    %48 = vector.shape_cast %47 : vector<1x1x128xf32> to vector<1x128xf32>
    %49 = vector.broadcast %48 : vector<1x128xf32> to vector<8x128xf32>
    %50 = arith.mulf %46, %49 : vector<8x128xf32>
    %c0_20 = arith.constant 0 : index
    %c0_21 = arith.constant 0 : index
    %c0_22 = arith.constant 0 : index
    %51 = vector.load %arg5[%c0_20, %c0_21, %c0_22] : memref<1x1x128xf32, #tpu.memory_space<vmem>>, vector<1x1x128xf32>
    %52 = vector.shape_cast %51 : vector<1x1x128xf32> to vector<1x128xf32>
    %53 = vector.broadcast %52 : vector<1x128xf32> to vector<8x128xf32>
    %54 = arith.addf %50, %53 : vector<8x128xf32>
    %c1_i32_23 = arith.constant 1 : i32
    %55 = arith.cmpi eq, %6, %c1_i32_23 : i32
    %56 = arith.select %55, %54, %26 : vector<8x128xf32>
    %c1_i32_24 = arith.constant 1 : i32
    %57 = arith.cmpi eq, %14, %c1_i32_24 : i32
    %c0_25 = arith.constant 0 : index
    %c0_26 = arith.constant 0 : index
    %58 = vector.load %arg8[%c0_25, %c0_26] : memref<8x128xf32, #tpu.memory_space<vmem>>, vector<8x128xf32>
    %59 = arith.addf %56, %58 : vector<8x128xf32>
    %60 = arith.select %57, %59, %56 : vector<8x128xf32>
    %c1_i32_27 = arith.constant 1 : i32
    %61 = arith.cmpi eq, %10, %c1_i32_27 : i32
    %cst_28 = arith.constant 0.000000e+00 : f32
    %62 = vector.broadcast %cst_28 : f32 to vector<8x128xf32>
    %63 = arith.maximumf %60, %62 : vector<8x128xf32>
    %64 = arith.select %61, %63, %60 : vector<8x128xf32>
    %65 = tpu.iota {dimensions = array<i32: 0>} : vector<8x1xi32>
    %c2_i32_29 = arith.constant 2 : i32
    %66 = vector.broadcast %c2_i32_29 : i32 to vector<8x1xi32>
    %67 = arith.cmpi slt, %65, %66 : vector<8x1xi32>
    %cst_30 = arith.constant 0.000000e+00 : f32
    %68 = vector.shape_cast %67 : vector<8x1xi1> to vector<8x1xi1>
    %69 = vector.broadcast %68 : vector<8x1xi1> to vector<8x128xi1>
    %70 = vector.broadcast %cst_30 : f32 to vector<8x128xf32>
    %71 = arith.select %69, %64, %70 : vector<8x128xi1>, vector<8x128xf32>
    %c0_31 = arith.constant 0 : index
    %c0_32 = arith.constant 0 : index
    %72 = vector.load %arg7[%c0_31, %c0_32] : memref<8x128xf32, #tpu.memory_space<vmem>>, vector<8x128xf32>
    tpu.vector_store %arg7[%c0_31, %c0_32], %71 {strides = array<i32>} : memref<8x128xf32, #tpu.memory_space<vmem>>, vector<8x128xf32>,
    %c26_i32 = arith.constant 26 : i32
    %73 = arith.cmpi eq, %arg0, %c26_i32 : i32
    %74 = arith.extui %73 : i1 to i32
    %c0_i32_33 = arith.constant 0 : i32
    %75 = arith.cmpi ne, %74, %c0_i32_33 : i32
    scf.if %75 {
      %c0_34 = arith.constant 0 : index
      %c0_35 = arith.constant 0 : index
      %76 = vector.load %arg6[%c0_34, %c0_35] : memref<8x128xf32, #tpu.memory_space<vmem>>, vector<8x128xf32>
      tpu.vector_store %arg6[%c0_34, %c0_35], %71 {strides = array<i32>} : memref<8x128xf32, #tpu.memory_space<vmem>>, vector<8x128xf32>,
    } else {
    }
    return
  }
  func.func @transform_0(%arg0: i32, %arg1: memref<108xi32, #tpu.memory_space<smem>>) -> (i32, i32) {
    %c0_i32 = arith.constant 0 : i32
    %c0_i32_0 = arith.constant 0 : i32
    %c0_i32_1 = arith.constant 0 : i32
    return %c0_i32, %c0_i32_0 : i32, i32
  }
  func.func @transform_1(%arg0: i32, %arg1: memref<108xi32, #tpu.memory_space<smem>>) -> (i32, i32, i32) {
    %c0_i32 = arith.constant 0 : i32
    %c0_i32_0 = arith.constant 0 : i32
    %c0_i32_1 = arith.constant 0 : i32
    return %arg0, %c0_i32, %c0_i32_0 : i32, i32, i32
  }
  func.func @transform_2(%arg0: i32, %arg1: memref<108xi32, #tpu.memory_space<smem>>) -> (i32, i32, i32) {
    %c0_i32 = arith.constant 0 : i32
    %c0_i32_0 = arith.constant 0 : i32
    %c0_i32_1 = arith.constant 0 : i32
    return %arg0, %c0_i32, %c0_i32_0 : i32, i32, i32
  }
  func.func @transform_3(%arg0: i32, %arg1: memref<108xi32, #tpu.memory_space<smem>>) -> (i32, i32, i32) {
    %c0_i32 = arith.constant 0 : i32
    %c0_i32_0 = arith.constant 0 : i32
    %c0_i32_1 = arith.constant 0 : i32
    return %arg0, %c0_i32, %c0_i32_0 : i32, i32, i32
  }
  func.func @transform_4(%arg0: i32, %arg1: memref<108xi32, #tpu.memory_space<smem>>) -> (i32, i32) {
    %c0_i32 = arith.constant 0 : i32
    %c0_i32_0 = arith.constant 0 : i32
    %c0_i32_1 = arith.constant 0 : i32
    return %c0_i32, %c0_i32_0 : i32, i32
  }
}

</mosaic_0001>

<llo_original>
// kernel: _lambda_.1
$region0: #{_lambda_.1}
  #allocation0 [shape = 'u32[]', space=smem, size = 0x4, offset = 0x4, fixed_abs, tag = 'smem constant byte address 0x4 - core index']
  #allocation1 [shape = 'u32[144,128]{1,0:T(1,128)}', space=vmem, size = 0x12000, scoped, tag = 'internal scratch']
  #allocation2 [shape = 'f32[8,128]{1,0:T(8,128)}', space=vmem, size = 0x1000, scoped, tag = 'scratch operand']
  #allocation3 [shape = 'f32[8,128]{1,0:T(8,128)}', space=vmem, size = 0x1000, scoped, tag = 'scratch operand']
  #allocation4 [shape = 's32[1]{0}', space=sflag, size = 0x4, scoped, tag = 'scoped memory for _lambda_.1']
  #allocation5 [shape = 'u8[512]{0}', space=smem, size = 0x200, scoped, tag = 'prefetched SMEM operand 0']
  %s0 = inlined_call_operand.vmem [shape: s32[108], index: 0, kind: input, shape index: {}]
  %s1 = inlined_call_operand.vmem [shape: f32[8,128], index: 1, kind: input, shape index: {}]
  %s2 = inlined_call_operand.hbm [shape: bf16[27,128,128], index: 2, kind: input, shape index: {}]
  %s3 = inlined_call_operand.vmem [shape: f32[27,1,128], index: 3, kind: input, shape index: {}]
  %s4 = inlined_call_operand.vmem [shape: f32[27,1,128], index: 4, kind: input, shape index: {}]
  %s5 = inlined_call_operand.vmem [shape: f32[8,128], index: 5, kind: output, shape index: {}]
  %s6 = sld [smem:[#allocation0]]
  $region65: #{_lambda_.1} parent=0
    _
  %s8 = ssub.s32 1, %s6
  %s9 = scalar_select 0, %s8, %s6
  %s10 = sshll.u32 %s0, 4
  %s11 = int_to_ptr.vmem [resolvable:$true] %s10
  %13 = dma.vmem_to_smem %s11, 16, [#allocation5], [#allocation4]
  %14 = dma.done [#allocation4], 16
  %15 = sfence
  $region1: #{_lambda_.1} parent=0
    #allocation6 [shape = 'u8[65536]{0}', space=vmem, size = 0x10000, scoped, tag = 'input window, operand 2']
    #allocation7 [shape = 's32[2]{0}', space=sflag, size = 0x8, scoped, tag = 'scoped memory for _lambda_.1']
    %16 = vsyncpa [#allocation7], 0
    %s17 = scalar_lea.sflag [#allocation7], 1
    %18 = vsyncpa %s17, 0
    loop: start=0, step=1, limit=29
    $region2: #{_lambda_.1} parent=1 // loop_pre_header
      _
    $region3: #{_lambda_.1} parent=1 // loop_header
      %s20 = sphi 0, %s24
      %p21 = scmp.ge.s32.totalorder %s20, 29
      %s28 = sphi 0, %s28
      %s30 = sphi 0, %s28
      %s31 = sphi 0, %s30
      %s45 = sphi 0, %s31
      %s51 = sphi 0, %s53
      %s54 = sphi 0, %s51
      %s55 = sphi 0, %s54
      %s71 = sphi 0, %s55
      %s77 = sphi 0, %s79
      %s80 = sphi 0, %s77
      %s81 = sphi 0, %s80
      %s97 = sphi 0, %s81
      %s103 = sphi 0, %s105
      %s106 = sphi 0, %s103
      %s107 = sphi 0, %s106
      %s123 = sphi 0, %s107
      %s127 = sphi 0, %s127
      %s129 = sphi 0, %s127
      %s130 = sphi 0, %s129
      %s144 = sphi 0, %s130
    $region4: #{_lambda_.1} parent=1 // loop_header_branch
      %23 = sbr.rel (%p21) target = $region8
    $region5: #{_lambda_.1} parent=1 // loop_body
      %s25 = ssub.s32 %s20, 1
      %s26 = ssub.s32 %s20, 2
      %s27 = sadd.s32 %s20, 1
      %s29 = sadd.s32 %s28, 1
      %p32 = scmp.eq.s32.totalorder %s20, 26
      %p33 = scmp.ne.s32.totalorder %s28, %s30
      %p34 = scmp.eq.s32.totalorder %s20, 0
      %p35 = por %p33, %p34
      %p36 = scmp.ne.s32.totalorder %s28, %s30
      %p37 = scmp.eq.s32.totalorder %s25, 26
      %p38 = por %p36, %p37
      %p39 = scmp.ne.s32.totalorder %s30, %s31
      %p40 = scmp.eq.s32.totalorder %s25, 0
      %p41 = por %p39, %p40
      %p42 = scmp.ne.s32.totalorder %s30, %s31
      %p43 = scmp.eq.s32.totalorder %s26, 26
      %p44 = por %p42, %p43
      %p46 = scmp.ne.s32.totalorder %s31, %s45
      %p47 = scmp.eq.s32.totalorder %s26, 0
      %p48 = por %p46, %p47
      %s49 = ssub.s32 %s20, %s27
      %p50 = scmp.eq.s32.totalorder %s49, 0
      %s52 = sadd.s32 %s51, 1
      %s53 = scalar_select %p50, %s51, %s52
      %p56 = pneg %p50
      %p57 = scmp.eq.s32.totalorder %s20, 26
      %p58 = por %p56, %p57
      %p59 = scmp.ne.s32.totalorder %s51, %s54
      %p60 = scmp.eq.s32.totalorder %s20, 0
      %p61 = por %p59, %p60
      %p62 = scmp.ne.s32.totalorder %s51, %s54
      %p63 = scmp.eq.s32.totalorder %s25, 26
      %p64 = por %p62, %p63
      %p65 = scmp.ne.s32.totalorder %s54, %s55
      %p66 = scmp.eq.s32.totalorder %s25, 0
      %p67 = por %p65, %p66
      %p68 = scmp.ne.s32.totalorder %s54, %s55
      %p69 = scmp.eq.s32.totalorder %s26, 26
      %p70 = por %p68, %p69
      %p72 = scmp.ne.s32.totalorder %s55, %s71
      %p73 = scmp.eq.s32.totalorder %s26, 0
      %p74 = por %p72, %p73
      %s75 = ssub.s32 %s20, %s27
      %p76 = scmp.eq.s32.totalorder %s75, 0
      %s78 = sadd.s32 %s77, 1
      %s79 = scalar_select %p76, %s77, %s78
      %p82 = pneg %p76
      %p83 = scmp.eq.s32.totalorder %s20, 26
      %p84 = por %p82, %p83
      %p85 = scmp.ne.s32.totalorder %s77, %s80
      %p86 = scmp.eq.s32.totalorder %s20, 0
      %p87 = por %p85, %p86
      %p88 = scmp.ne.s32.totalorder %s77, %s80
      %p89 = scmp.eq.s32.totalorder %s25, 26
      %p90 = por %p88, %p89
      %p91 = scmp.ne.s32.totalorder %s80, %s81
      %p92 = scmp.eq.s32.totalorder %s25, 0
      %p93 = por %p91, %p92
      %p94 = scmp.ne.s32.totalorder %s80, %s81
      %p95 = scmp.eq.s32.totalorder %s26, 26
      %p96 = por %p94, %p95
      %p98 = scmp.ne.s32.totalorder %s81, %s97
      %p99 = scmp.eq.s32.totalorder %s26, 0
      %p100 = por %p98, %p99
      %s101 = ssub.s32 %s20, %s27
      %p102 = scmp.eq.s32.totalorder %s101, 0
      %s104 = sadd.s32 %s103, 1
      %s105 = scalar_select %p102, %s103, %s104
      %p108 = pneg %p102
      %p109 = scmp.eq.s32.totalorder %s20, 26
      %p110 = por %p108, %p109
      %p111 = scmp.ne.s32.totalorder %s103, %s106
      %p112 = scmp.eq.s32.totalorder %s20, 0
      %p113 = por %p111, %p112
      %p114 = scmp.ne.s32.totalorder %s103, %s106
      %p115 = scmp.eq.s32.totalorder %s25, 26
      %p116 = por %p114, %p115
      %p117 = scmp.ne.s32.totalorder %s106, %s107
      %p118 = scmp.eq.s32.totalorder %s25, 0
      %p119 = por %p117, %p118
      %p120 = scmp.ne.s32.totalorder %s106, %s107
      %p121 = scmp.eq.s32.totalorder %s26, 26
      %p122 = por %p120, %p121
      %p124 = scmp.ne.s32.totalorder %s107, %s123
      %p125 = scmp.eq.s32.totalorder %s26, 0
      %p126 = por %p124, %p125
      %s128 = sadd.s32 %s127, 1
      %p131 = scmp.eq.s32.totalorder %s20, 26
      %p132 = scmp.ne.s32.totalorder %s127, %s129
      %p133 = scmp.eq.s32.totalorder %s20, 0
      %p134 = por %p132, %p133
      %p135 = scmp.ne.s32.totalorder %s127, %s129
      %p136 = scmp.eq.s32.totalorder %s25, 26
      %p137 = por %p135, %p136
      %p138 = scmp.ne.s32.totalorder %s129, %s130
      %p139 = scmp.eq.s32.totalorder %s25, 0
      %p140 = por %p138, %p139
      %p141 = scmp.ne.s32.totalorder %s129, %s130
      %p142 = scmp.eq.s32.totalorder %s26, 26
      %p143 = por %p141, %p142
      %p145 = scmp.ne.s32.totalorder %s130, %s144
      %p146 = scmp.eq.s32.totalorder %s26, 0
      %p147 = por %p145, %p146
      %p148 = scmp.le.s32.totalorder 1, %s20
      %p149 = scmp.lt.s32.totalorder %s20, 28
      %p150 = pnand %p148, %p149
      %p151 = pneg %p150
      // Predicated region
      $region9: #{_lambda_.1} parent=5 // pred_check
        _
      $region10: #{_lambda_.1} parent=5 // pred_check_branch
        %153 = sbr.rel (%p150) target = $region12
      $region11: #{_lambda_.1} parent=5 // pred_region
        %s154 = ssub.s32 %s20, 1
        // Predicated region
        $region13: #{_lambda_.1} parent=11 // pred_check
          %p155 = pneg %p41
        $region14: #{_lambda_.1} parent=11 // pred_check_branch
          %157 = sbr.rel (%p155) target = $region16
        $region15: #{_lambda_.1} parent=11 // pred_region
          _
        $region16: #{_lambda_.1} parent=11 // pred_fallthru
          _
      $region12: #{_lambda_.1} parent=5 // pred_fallthru
        _
      %p158 = scmp.lt.s32.totalorder %s20, 27
      // Predicated region
      $region17: #{_lambda_.1} parent=5 // pred_check
        %p159 = pneg %p158
      $region18: #{_lambda_.1} parent=5 // pred_check_branch
        %161 = sbr.rel (%p159) target = $region20
      $region19: #{_lambda_.1} parent=5 // pred_region
        // Predicated region
        $region21: #{_lambda_.1} parent=19 // pred_check
          %p162 = pneg %p61
        $region22: #{_lambda_.1} parent=19 // pred_check_branch
          %164 = sbr.rel (%p162) target = $region24
        $region23: #{_lambda_.1} parent=19 // pred_region
          %s165 = sand.u32 %s51, 1
          %s166 = scalar_lea.sflag [#allocation7], %s165
          %s167 = sand.u32 %s51, 1
          %s168 = smul.addr %s167, 64
          %s169 = scalar_lea.vmem [#allocation6], %s168
          %s171 = ssub.s32 1024, 1024
          %172 = vsyncadd %s166, %s171
          %s173 = smul.addr %s20, 16
          %s174 = smul.addr %s173, 64
          %s175 = scalar_lea.hbm %s2, %s174
          %s176 = sshll.u32 %s169, 4
          %s177 = int_to_ptr.vmem [resolvable:$true] %s176
          %182 = dma.hbm_to_vmem [thread:$0]  %s175, 1024, %s177, %s166, 64, 64, 4
        $region24: #{_lambda_.1} parent=19 // pred_fallthru
          _
        // Predicated region
        $region25: #{_lambda_.1} parent=19 // pred_check
          %p183 = pneg %p87
        $region26: #{_lambda_.1} parent=19 // pred_check_branch
          %185 = sbr.rel (%p183) target = $region28
        $region27: #{_lambda_.1} parent=19 // pred_region
          %p186 = scmp.lt.s32.totalorder %s20, 26
          %s187 = scalar_select %p186, %s20, 26
          %s188 = scalar_lea.vmem %s3, %s187
        $region28: #{_lambda_.1} parent=19 // pred_fallthru
          _
        // Predicated region
        $region29: #{_lambda_.1} parent=19 // pred_check
          %p189 = pneg %p113
        $region30: #{_lambda_.1} parent=19 // pred_check_branch
          %191 = sbr.rel (%p189) target = $region32
        $region31: #{_lambda_.1} parent=19 // pred_region
          %p192 = scmp.lt.s32.totalorder %s20, 26
          %s193 = scalar_select %p192, %s20, 26
          %s194 = scalar_lea.vmem %s4, %s193
        $region32: #{_lambda_.1} parent=19 // pred_fallthru
          _
      $region20: #{_lambda_.1} parent=5 // pred_fallthru
        _
      %p195 = scmp.le.s32.totalorder 1, %s20
      %p196 = scmp.lt.s32.totalorder %s20, 28
      %p197 = pnand %p195, %p196
      %p198 = pneg %p197
      // Predicated region
      $region33: #{_lambda_.1} parent=5 // pred_check
        _
      $region34: #{_lambda_.1} parent=5 // pred_check_branch
        %200 = sbr.rel (%p197) target = $region36
      $region35: #{_lambda_.1} parent=5 // pred_region
        %s201 = ssub.s32 %s20, 1
        %s202 = sand.u32 %s54, 1
        %s203 = scalar_lea.sflag [#allocation7], %s202
        %s204 = sand.u32 %s54, 1
        %s205 = smul.addr %s204, 64
        %s206 = scalar_lea.vmem [#allocation6], %s205
        // Predicated region
        $region37: #{_lambda_.1} parent=35 // pred_check
          %p207 = pneg %p67
        $region38: #{_lambda_.1} parent=35 // pred_check_branch
          %209 = sbr.rel (%p207) target = $region40
        $region39: #{_lambda_.1} parent=35 // pred_region
          %210 = dma.done %s203, 1024
        $region40: #{_lambda_.1} parent=35 // pred_fallthru
          _
        %p211 = pneg %p41
        %p212 = pneg %p38
        %s213 = sand.u32 %s54, 1
        %s214 = scalar_lea.sflag [#allocation7], %s213
        %s215 = sand.u32 %s54, 1
        %s216 = smul.addr %s215, 64
        %s217 = scalar_lea.vmem [#allocation6], %s216
        %p218 = pneg %p67
        %p219 = pneg %p64
        %p220 = scmp.lt.s32.totalorder %s25, 26
        %s221 = scalar_select %p220, %s25, 26
        %s222 = scalar_lea.vmem %s3, %s221
        %p223 = pneg %p93
        %p224 = pneg %p90
        %p225 = scmp.lt.s32.totalorder %s25, 26
        %s226 = scalar_select %p225, %s25, 26
        %s227 = scalar_lea.vmem %s4, %s226
        %p228 = pneg %p119
        %p229 = pneg %p116
        %p230 = pneg %p140
        %p231 = pneg %p137
        %p232 = scmp.lt.s32.totalorder %s25, 26
        %s233 = scalar_select %p232, %s25, 26
        %s234 = scalar_lea.vmem %s3, %s233
        %p235 = scmp.lt.s32.totalorder %s25, 26
        %s236 = scalar_select %p235, %s25, 26
        %s237 = scalar_lea.vmem %s4, %s236
        %p239 = scmp.eq.s32.totalorder %s25, 0
        // Predicated region
        $region41: #{_lambda_.1} parent=35 // pred_check
          %p240 = pneg %p239
        $region42: #{_lambda_.1} parent=35 // pred_check_branch
          %242 = sbr.rel (%p240) target = $region44
        $region43: #{_lambda_.1} parent=35 // pred_region
          %v243 = vld [vmem:[%s1] sm:$0xff]
          %244 = vst [vmem:[#allocation2] sm:$0xff] %v243
          %v245 = vld [vmem:[%s1] sm:$0xff]
          %246 = vst [vmem:[#allocation3] sm:$0xff] %v245
        $region44: #{_lambda_.1} parent=35 // pred_fallthru
          _
        %s247 = smul.u32 %s25, 4
        %s248 = sld [smem:[#allocation5 + %s247]]
        %s249 = sadd.s32 %s247, 1
        %s250 = sld [smem:[#allocation5 + %s249]]
        %s251 = sadd.s32 %s247, 2
        %s252 = sld [smem:[#allocation5 + %s251]]
        %s253 = sadd.s32 %s247, 3
        %s254 = sld [smem:[#allocation5 + %s253]]
        %v255 = vld [vmem:[#allocation2] sm:$0xff]
        %p256 = scmp.eq.s32.totalorder %s254, 1
        // Predicated region
        $region45: #{_lambda_.1} parent=35 // pred_check
          %p257 = pneg %p256
        $region46: #{_lambda_.1} parent=35 // pred_check_branch
          %259 = sbr.rel (%p257) target = $region48
        $region47: #{_lambda_.1} parent=35 // pred_region
          %260 = vst [vmem:[#allocation3] sm:$0xff] %v255
        $region48: #{_lambda_.1} parent=35 // pred_fallthru
          _
        %v261 = vpack.c.bf16 %v255, %v255
        %v262 = vld [vmem:[%s206] sm:$0xf]
        %v263 = vld [vmem:[%s206 + $0x4] sm:$0xf]
        %v264 = vld [vmem:[%s206 + $0x8] sm:$0xf]
        %v265 = vld [vmem:[%s206 + $0xc] sm:$0xf]
        %v266 = vld [vmem:[%s206 + $0x10] sm:$0xf]
        %v267 = vld [vmem:[%s206 + $0x14] sm:$0xf]
        %v268 = vld [vmem:[%s206 + $0x18] sm:$0xf]
        %v269 = vld [vmem:[%s206 + $0x1c] sm:$0xf]
        %v270 = vld [vmem:[%s206 + $0x20] sm:$0xf]
        %v271 = vld [vmem:[%s206 + $0x24] sm:$0xf]
        %v272 = vld [vmem:[%s206 + $0x28] sm:$0xf]
        %v273 = vld [vmem:[%s206 + $0x2c] sm:$0xf]
        %v274 = vld [vmem:[%s206 + $0x30] sm:$0xf]
        %v275 = vld [vmem:[%s206 + $0x34] sm:$0xf]
        %v276 = vld [vmem:[%s206 + $0x38] sm:$0xf]
        %v277 = vld [vmem:[%s206 + $0x3c] sm:$0xf]
        %v294 = vunpack.c.l.b16 %v262
        %v295 = vunpack.c.l.b16 %v263
        %v296 = vunpack.c.l.b16 %v264
        %v297 = vunpack.c.l.b16 %v265
        %v298 = vunpack.c.l.b16 %v266
        %v299 = vunpack.c.l.b16 %v267
        %v300 = vunpack.c.l.b16 %v268
        %v301 = vunpack.c.l.b16 %v269
        %v302 = vunpack.c.l.b16 %v270
        %v303 = vunpack.c.l.b16 %v271
        %v304 = vunpack.c.l.b16 %v272
        %v305 = vunpack.c.l.b16 %v273
        %v306 = vunpack.c.l.b16 %v274
        %v307 = vunpack.c.l.b16 %v275
        %v308 = vunpack.c.l.b16 %v276
        %v309 = vunpack.c.l.b16 %v277
        %v310 = vpack.c.b16 %v295, %v294
        %v311 = vpack.c.b16 %v297, %v296
        %v312 = vpack.c.b16 %v299, %v298
        %v313 = vpack.c.b16 %v301, %v300
        %v314 = vpack.c.b16 %v303, %v302
        %v315 = vpack.c.b16 %v305, %v304
        %v316 = vpack.c.b16 %v307, %v306
        %v317 = vpack.c.b16 %v309, %v308
        %326 = vmatprep.subr.bf16.mxu0 0
        %327 = vmatpush1.bf16.msra.mxu0 %v310
        %328 = vmatprep.subr.bf16.mxu0 0
        %329 = vmatpush1.bf16.msra.mxu0 %v311
        %330 = vmatprep.subr.bf16.mxu0 0
        %331 = vmatpush1.bf16.msra.mxu0 %v312
        %332 = vmatprep.subr.bf16.mxu0 0
        %333 = vmatpush1.bf16.msra.mxu0 %v313
        %334 = vmatprep.subr.bf16.mxu0 0
        %335 = vmatpush1.bf16.msra.mxu0 %v314
        %336 = vmatprep.subr.bf16.mxu0 0
        %337 = vmatpush1.bf16.msra.mxu0 %v315
        %338 = vmatprep.subr.bf16.mxu0 0
        %339 = vmatpush1.bf16.msra.mxu0 %v316
        %340 = vmatprep.subr.bf16.mxu0 0
        %341 = vmatpush1.bf16.msra.mxu0 %v317
        %342 = vmatprep.subr.bf16.mxu0 0
        %343 = vmatpush1.bf16.msra.mxu0 0
        %344 = vmatprep.subr.bf16.mxu0 0
        %345 = vmatpush1.bf16.msra.mxu0 0
        %346 = vmatprep.subr.bf16.mxu0 0
        %347 = vmatpush1.bf16.msra.mxu0 0
        %348 = vmatprep.subr.bf16.mxu0 0
        %349 = vmatpush1.bf16.msra.mxu0 0
        %350 = vmatprep.subr.bf16.mxu0 0
        %351 = vmatpush1.bf16.msra.mxu0 0
        %352 = vmatprep.subr.bf16.mxu0 0
        %353 = vmatpush1.bf16.msra.mxu0 0
        %354 = vmatprep.subr.bf16.mxu0 0
        %355 = vmatpush1.bf16.msra.mxu0 0
        %356 = vmatprep.subr.bf16.mxu0 0
        %357 = vmatpush1.bf16.msra.mxu0 0
        %358 = vmatprep.mubr.bf16.mxu0 0
        %359 = vmatmul.mubr.bf16.gmra.mrb[0].mxu0 %v261
        %v360 = vpop.f32.mrb[0].mxu0
        %v361 = vadd.f32 0.0, %v360
        %v362 = vpop.f32.mrb[0].mxu0
        %v363 = vpop.f32.mrb[0].mxu0
        %v364 = vpop.f32.mrb[0].mxu0
        %365 = vdwg.mxu0
        %v366 = vrot.slane %v361, 4
        %v367 = vadd.f32 %v361, %v366
        %v368 = vrot.slane %v367, 2
        %v369 = vadd.f32 %v367, %v368
        %v370 = vrot.slane %v369, 1
        %v371 = vadd.f32 %v369, %v370
        %v372 = vmul.f32 %v371, 0.5
        %v373 = vmul.f32 %v361, %v361
        %v374 = vrot.slane %v373, 4
        %v375 = vadd.f32 %v373, %v374
        %v376 = vrot.slane %v375, 2
        %v377 = vadd.f32 %v375, %v376
        %v378 = vrot.slane %v377, 1
        %v379 = vadd.f32 %v377, %v378
        %v380 = vmul.f32 %v379, 0.5
        %v381 = vmul.f32 %v372, %v372
        %v382 = vsub.f32 %v380, %v381
        %v383 = vmax.f32 %v382, 0.0
        %v384 = vsub.f32 %v361, %v372
        %v385 = vadd.f32 %v383, 1e-05
        %v386 = vrsqrt.pop %v385
        %v387 = vmul.f32 %v384, %v386
        %v388 = vld [vmem:[%s234] sm:$0x1]
        %v390 = vlaneseq
        %v391 = vshrl.u32 %v390, 7
        %v392 = vsub.s32 0, %v391
        %v393 = vrot.slane %v388, %v392
        %v395 = vmul.f32 %v387, %v393
        %v396 = vld [vmem:[%s237] sm:$0x1]
        %v398 = vlaneseq
        %v399 = vshrl.u32 %v398, 7
        %v400 = vsub.s32 0, %v399
        %v401 = vrot.slane %v396, %v400
        %v403 = vadd.f32 %v395, %v401
        %p404 = scmp.eq.s32.totalorder %s248, 1
        %s405 = scalar_select %p404, 1, 0
        %v406 = vstv %s405
        %vm407 = vcmp.eq.s32.totalorder %v406, 1
        %v408 = vsel %vm407, %v403, %v361
        %p409 = scmp.eq.s32.totalorder %s252, 1
        %v410 = vld [vmem:[#allocation3] sm:$0xff]
        %v411 = vadd.f32 %v408, %v410
        %s412 = scalar_select %p409, 1, 0
        %v413 = vstv %s412
        %vm414 = vcmp.eq.s32.totalorder %v413, 1
        %v415 = vsel %vm414, %v411, %v408
        %p416 = scmp.eq.s32.totalorder %s250, 1
        %v417 = vmax.f32 %v415, 0.0
        %s418 = scalar_select %p416, 1, 0
        %v419 = vstv %s418
        %vm420 = vcmp.eq.s32.totalorder %v419, 1
        %v421 = vsel %vm420, %v417, %v415
        %v422 = vlaneseq
        %v423 = vshrl.u32 %v422, 7
        %vm424 = vcmp.lt.s32.totalorder %v423, 2
        %v425 = vsel %vm424, 1, 0
        %vm426 = vcmp.eq.s32.totalorder %v425, 1
        %v427 = vsel %vm426, %v421, 0.0
        %428 = vst [vmem:[#allocation2] sm:$0xff] %v427
        %p429 = scmp.eq.s32.totalorder %s25, 26
        // Predicated region
        $region49: #{_lambda_.1} parent=35 // pred_check
          %p430 = pneg %p429
        $region50: #{_lambda_.1} parent=35 // pred_check_branch
          %432 = sbr.rel (%p430) target = $region52
        $region51: #{_lambda_.1} parent=35 // pred_region
          %433 = vst [vmem:[%s5] sm:$0xff] %v427
        $region52: #{_lambda_.1} parent=35 // pred_fallthru
          _
        // Predicated region
        $region53: #{_lambda_.1} parent=35 // pred_check
          %p434 = pneg %p137
        $region54: #{_lambda_.1} parent=35 // pred_check_branch
          %436 = sbr.rel (%p434) target = $region56
        $region55: #{_lambda_.1} parent=35 // pred_region
          _
        $region56: #{_lambda_.1} parent=35 // pred_fallthru
          _
        // Predicated region
        $region57: #{_lambda_.1} parent=35 // pred_check
          %p437 = pneg %p137
        $region58: #{_lambda_.1} parent=35 // pred_check_branch
          %439 = sbr.rel (%p437) target = $region60
        $region59: #{_lambda_.1} parent=35 // pred_region
          _
        $region60: #{_lambda_.1} parent=35 // pred_fallthru
          _
      $region36: #{_lambda_.1} parent=5 // pred_fallthru
        _
      %p440 = scmp.le.s32.totalorder 2, %s20
      // Predicated region
      $region61: #{_lambda_.1} parent=5 // pred_check
        %p441 = pneg %p440
      $region62: #{_lambda_.1} parent=5 // pred_check_branch
        %443 = sbr.rel (%p441) target = $region64
      $region63: #{_lambda_.1} parent=5 // pred_region
        %s444 = ssub.s32 %s20, 2
      $region64: #{_lambda_.1} parent=5 // pred_fallthru
        _
    $region6: #{_lambda_.1} parent=1 // loop_footer
      %s24 = sadd.s32 1, %s20
    $region7: #{_lambda_.1} parent=1 // loop_footer_branch
      %19 = sbr.rel target = $region3
    $region8: #{_lambda_.1} parent=1 // loop_exit
      _
    %445 = vsyncpa [#allocation7], 1
    %s446 = scalar_lea.sflag [#allocation7], 1
    %447 = vsyncpa %s446, 1

</llo_original>
